<compile_context>
chip_gen: v7x
topology: tpu7x:2x2x1
jax: 0.10.0
libtpu: 0.0.40
codegen_flags: <defaults>
</compile_context>

<pallas_src>
import math

import jax
import jax.numpy as jnp
from jax.experimental import pallas as pl
from jax.experimental.pallas import tpu as pltpu


def _copy_kernel(p_ref, o_ref):
    # Identity / materialization: forward() just returns the parameter.
    o_ref[...] = p_ref[...]


def _materialized_copy(p: jax.Array) -> jax.Array:
    """Materialize a fresh copy of p (shape (1, n)) via a Pallas memcpy."""
    n = p.shape[1]
    dtype = jnp.dtype(p.dtype)
    bytes_accessed = 2 * n * dtype.itemsize  # read + write

    # Widest lane-dense width (multiple of 128) dividing n, capped at 1024 so
    # each tile buffer is <= 512 rows * 1024 lanes * 4 B = 2 MiB.
    lane_w = 0
    for w in (1024, 512, 256, 128):
        if n % w == 0:
            lane_w = w
            break

    if lane_w == 0 or (n // lane_w) < 8:
        # Small / irregular n: single whole-array block, no grid/index_map
        # boilerplate.  Full-extent blocks are always layout-legal.
        return pl.pallas_call(
            _copy_kernel,
            out_shape=jax.ShapeDtypeStruct(p.shape, p.dtype),
            in_specs=[pl.BlockSpec(memory_space=pltpu.MemorySpace.VMEM)],
            out_specs=pl.BlockSpec(memory_space=pltpu.MemorySpace.VMEM),
            cost_estimate=pl.CostEstimate(
                flops=0, transcendentals=0, bytes_accessed=bytes_accessed),
        )(p)

    rows = n // lane_w
    p2 = p.reshape(rows, lane_w)

    # Row tile: big enough to approach HBM roofline, multiple of 8 sublanes,
    # capped so double-buffered in+out <= 8 MiB (fits every generation's
    # scoped-VMEM default: 16 MiB v5e, 32 MiB v6e/v7x).
    tile_rows = min(rows, 512)
    if tile_rows < rows:
        tile_rows = max(8, (tile_rows // 8) * 8)
    grid = (pl.cdiv(rows, tile_rows),)

    out2 = pl.pallas_call(
        _copy_kernel,
        out_shape=jax.ShapeDtypeStruct((rows, lane_w), p.dtype),
        grid=grid,
        in_specs=[pl.BlockSpec((tile_rows, lane_w), lambda i: (i, 0))],
        out_specs=pl.BlockSpec((tile_rows, lane_w), lambda i: (i, 0)),
        compiler_params=pltpu.CompilerParams(
            # 'parallel' lets v7x split the pure-bandwidth copy across both
            # TensorCores; no-op on single-TC v5e/v6e.
            dimension_semantics=("parallel",)),
        cost_estimate=pl.CostEstimate(
            flops=0, transcendentals=0, bytes_accessed=bytes_accessed),
    )(p2)
    return out2.reshape(1, n)


def estimate_p_forward(p: jax.Array, materialize: bool = False) -> jax.Array:
    """EstimateP.forward(): returns the parameter.

    Default path launches no kernel (forward is identity -> zero overhead).
    Set materialize=True only if a distinct HBM copy is required; that path
    runs the lane-dense, pipelined Pallas memcpy above.
    """
    assert p.ndim == 2 and p.shape[0] == 1, "p must have shape (1, n)"
    if not materialize:
        return p
    return _materialized_copy(p)


def init_estimate_p(key: jax.Array, n: int) -> jax.Array:
    """Matches the PyTorch init: uniform(-1/sqrt(n), 1/sqrt(n)), shape (1, n).
    (The 'citeseer' ones-init in the reference is immediately overwritten, so
    the effective init is always the uniform one.)"""
    stdv = 1.0 / math.sqrt(n)
    return jax.random.uniform(
        key, (1, n), dtype=jnp.float32, minval=-stdv, maxval=stdv
    )


if __name__ == "__main__":
    key = jax.random.PRNGKey(0)
    k1, k2 = jax.random.split(key)

    # Case 1: small n (like the original test) -> identity fast path + the
    # small-n whole-block Pallas copy path.
    n_small = 32
    p_small = init_estimate_p(k1, n_small)
    out_fast = estimate_p_forward(p_small)                      # no kernel
    out_copy = estimate_p_forward(p_small, materialize=True)    # Pallas copy
    out_copy = jax.block_until_ready(out_copy)
    assert out_fast.shape == (1, n_small) and out_copy.shape == (1, n_small)
    assert bool(jnp.allclose(out_fast, p_small))
    assert bool(jnp.allclose(out_copy, p_small))

    # Case 2: lane-dense n -> tiled, pipelined Pallas copy path.
    n_dense = 8192  # reshapes to an (8, 1024) sublane/lane-dense slab
    p_dense = init_estimate_p(k2, n_dense)
    out_dense = estimate_p_forward(p_dense, materialize=True)
    out_dense = jax.block_until_ready(out_dense)
    assert out_dense.shape == (1, n_dense)
    assert out_dense.dtype == jnp.float32
    assert bool(jnp.allclose(out_dense, p_dense))

    print("KERNEL_OK")
</pallas_src>

<mosaic_0001>
module attributes {stable_mosaic.version = 11 : i64} {
  func.func @_copy_kernel(%arg0: memref<1x32xf32, #tpu.memory_space<vmem>>, %arg1: memref<1x32xf32, #tpu.memory_space<vmem>>) attributes {dimension_semantics = [], scalar_prefetch = 0 : i64, scratch_operands = 0 : i64, tpu.core_type = #tpu.core_type<tc>} {
    %c0 = arith.constant 0 : index
    %c0_0 = arith.constant 0 : index
    %0 = vector.load %arg0[%c0, %c0_0] : memref<1x32xf32, #tpu.memory_space<vmem>>, vector<1x32xf32>
    %c0_1 = arith.constant 0 : index
    %c0_2 = arith.constant 0 : index
    %1 = vector.load %arg1[%c0_1, %c0_2] : memref<1x32xf32, #tpu.memory_space<vmem>>, vector<1x32xf32>
    tpu.vector_store %arg1[%c0_1, %c0_2], %0 {strides = array<i32>} : memref<1x32xf32, #tpu.memory_space<vmem>>, vector<1x32xf32>,
    return
  }
}

</mosaic_0001>

<llo_original>
// kernel: tpu_custom_call.1
$region0: #{tpu_custom_call.1}
  #allocation0 [shape = 'u32[]', space=smem, size = 0x4, offset = 0x4, fixed_abs, tag = 'smem constant byte address 0x4 - core index']
  #allocation1 [shape = 'u32[144,128]{1,0:T(1,128)}', space=vmem, size = 0x12000, scoped, tag = 'internal scratch']
  %s0 = inlined_call_operand.hbm [shape: f32[1,32], index: 0, kind: input, shape index: {}]
  %s1 = inlined_call_operand.hbm [shape: f32[1,32], index: 1, kind: output, shape index: {}]
  %s2 = sld [smem:[#allocation0]]
  $region18: #{tpu_custom_call.1} parent=0
    _
  %s4 = ssub.s32 1, %s2
  %s5 = scalar_select 0, %s4, %s2
  $region1: #{tpu_custom_call.1} parent=0
    #allocation2 [shape = 'u8[512]{0}', space=vmem, size = 0x400, scoped, tag = 'input window, operand 0, single buffered']
    #allocation3 [shape = 's32[1]{0}', space=sflag, size = 0x4, scoped, tag = 'scoped memory for tpu_custom_call.1']
    #allocation4 [shape = 's32[1]{0}', space=sflag, size = 0x4, scoped, tag = 'scoped memory for tpu_custom_call.1']
    #allocation5 [shape = 'u8[512]{0}', space=vmem, size = 0x400, scoped, tag = 'output window, operand 0, single buffered']
    %6 = vsyncpa [#allocation3], 0
    %7 = vsyncpa [#allocation4], 0
    // Predicated region
    $region2: #{tpu_custom_call.1} parent=1 // pred_check
      _
    $region3: #{tpu_custom_call.1} parent=1 // pred_check_branch
      %9 = sbr.rel (0) target = $region5
    $region4: #{tpu_custom_call.1} parent=1 // pred_region
      %s11 = ssub.s32 16, 16
      %12 = vsyncadd [#allocation3], %s11
      %s14 = sshll.u32 [#allocation2], 4
      %s15 = int_to_ptr.vmem [resolvable:$true] %s14
      %17 = dma.hbm_to_vmem [thread:$0]  %s0, 16, %s15, [#allocation3]
    $region5: #{tpu_custom_call.1} parent=1 // pred_fallthru
      _
    // Predicated region
    $region6: #{tpu_custom_call.1} parent=1 // pred_check
      _
    $region7: #{tpu_custom_call.1} parent=1 // pred_check_branch
      %19 = sbr.rel (0) target = $region9
    $region8: #{tpu_custom_call.1} parent=1 // pred_region
      %20 = dma.done [#allocation3], 16
    $region9: #{tpu_custom_call.1} parent=1 // pred_fallthru
      _
    %v21 = vld [vmem:[#allocation2] sm:$0x1]
    %vm22 = vcmask 253952
    %23 = vst.msk [vmem:[#allocation5] sm:$0x1] %vm22, %v21
    // Predicated region
    $region10: #{tpu_custom_call.1} parent=1 // pred_check
      _
    $region11: #{tpu_custom_call.1} parent=1 // pred_check_branch
      %25 = sbr.rel (0) target = $region13
    $region12: #{tpu_custom_call.1} parent=1 // pred_region
      %s27 = ssub.s32 16, 16
      %28 = vsyncadd [#allocation4], %s27
      %s30 = sshll.u32 [#allocation5], 4
      %s31 = int_to_ptr.vmem [resolvable:$true] %s30
      %33 = dma.vmem_to_hbm [thread:$0]  %s31, 16, %s1, [#allocation4]
    $region13: #{tpu_custom_call.1} parent=1 // pred_fallthru
      _
    // Predicated region
    $region14: #{tpu_custom_call.1} parent=1 // pred_check
      _
    $region15: #{tpu_custom_call.1} parent=1 // pred_check_branch
      %35 = sbr.rel (0) target = $region17
    $region16: #{tpu_custom_call.1} parent=1 // pred_region
      %36 = dma.done [#allocation4], 16
    $region17: #{tpu_custom_call.1} parent=1 // pred_fallthru
      _
    %37 = vsyncpa [#allocation3], 1
    %38 = vsyncpa [#allocation4], 1

</llo_original>
